<compile_context>
chip_gen: v6e
topology: v6e:2x2x1
jax: 0.10.0
libtpu: 0.0.40
codegen_flags: <defaults>
</compile_context>

<pallas_src>
import jax
import jax.numpy as jnp
from jax.experimental import pallas as pl
from jax.experimental.pallas import tpu as pltpu


def memory_gate_kernel(t_ref, m_ref, w1t_ref, w1m_ref, b1_ref, w2_ref, b2_ref, o_ref):
    # First linear with the concat fused away (MXU, f32 accumulate):
    #   (tile, Dp) @ (Dp, Dp) + (tile, Dp) @ (Dp, Dp) + (1, Dp)
    h = (jnp.dot(t_ref[...], w1t_ref[...], preferred_element_type=jnp.float32)
         + jnp.dot(m_ref[...], w1m_ref[...], preferred_element_type=jnp.float32)
         + b1_ref[...].astype(jnp.float32))
    h = jnp.maximum(h, 0.0)                                    # ReLU (VPU)
    # Second linear as a (block-diagonal) matmul: for the packed small-D layout this
    # is the segmented per-row reduction; for P == 1 it is the plain D -> 1 projection.
    logit = jnp.dot(h, w2_ref[...].astype(jnp.float32),
                    preferred_element_type=jnp.float32) + b2_ref[0]
    o_ref[...] = jax.nn.sigmoid(logit).astype(o_ref.dtype)


def _round_up(x, m):
    return (x + m - 1) // m * m


def memory_gate(text, memory, w1, b1, w2, b2):
    """text, memory: (B, S, D). w1: (2D, D), b1: (D,), w2: (D, 1), b2: (1,)."""
    B, S, D = text.shape
    N = B * S
    in_itemsize = jnp.dtype(text.dtype).itemsize
    w_itemsize = jnp.dtype(w1.dtype).itemsize

    # ---- small-D lane packing: fold P consecutive rows into one (<=128)-lane row so
    # each MXU push carries Dp valid lanes instead of D. The reshape is free
    # (contiguous row-major); the weights become block-diagonal replicas.
    P = 1
    if D < 128 and 128 % D == 0:
        for cand in range(128 // D, 0, -1):
            if N % cand == 0:
                P = cand
                break
    Dp = P * D
    Np = N // P

    t2 = text.reshape(Np, Dp)
    m2 = memory.reshape(Np, Dp)

    # Split W1 into the text half and the memory half (fused concat).
    w1t = w1[:D, :]
    w1m = w1[D:, :]
    if P > 1:
        eye = jnp.eye(P, dtype=w1.dtype)
        w1t = jnp.kron(eye, w1t)                 # (Dp, Dp) block-diagonal
        w1m = jnp.kron(eye, w1m)                 # (Dp, Dp) block-diagonal
        w2p = jnp.kron(eye, w2.reshape(D, 1))    # (Dp, P)  block-diagonal
        b1p = jnp.tile(b1, P).reshape(1, Dp)
    else:
        w2p = w2.reshape(D, 1)
        b1p = b1.reshape(1, D)
    b2s = b2.reshape(1).astype(jnp.float32)

    # ---- generation-aware tiling / VMEM budget.
    try:
        kind = jax.devices()[0].device_kind.lower()
    except Exception:
        kind = ""
    is_v7 = "v7" in kind
    vmem_cap = (40 if is_v7 else 96) * 1024 * 1024   # v7x: 64 MiB physical VMEM / TC

    # Row tile from a per-step byte target so the ~0.35us fixed per-grid-step
    # overhead is amortized (HBM is faster on v7x, so a smaller target suffices).
    target = (2 if is_v7 else 4) * 1024 * 1024
    tile = _round_up(max(1, target // max(1, Dp * in_itemsize)), 512)
    tile = max(512, min(tile, 8192))
    if tile >= Np:
        tile = Np            # single full-extent block (always a legal block shape)

    lanes = 128
    dpl = _round_up(Dp, lanes)
    ppl = _round_up(P, lanes)

    def vmem_bytes(t):
        # (8,128)-layout-padded, double-buffered accounting.
        t8 = _round_up(max(t, 1), 8)
        act = 2 * 2 * t8 * dpl * in_itemsize                    # text+mem streams
        wts = 2 * (2 * _round_up(Dp, 8) * dpl + 8 * dpl
                   + _round_up(Dp, 8) * ppl) * w_itemsize       # W1 halves, b1, W2
        out = 2 * t8 * ppl * 4                                  # output (lane padded)
        tmp = 2 * t8 * dpl * 4                                  # f32 intermediates
        return act + wts + out + tmp

    while tile > 8 and vmem_bytes(tile) > int(0.7 * vmem_cap):
        tile = max(8, _round_up(tile // 2, 8))

    grid_n = pl.cdiv(Np, tile)
    # v7x megacore: avoid a single-step grid for mid-size inputs so both TCs get work.
    if is_v7 and grid_n == 1 and Np >= 2048:
        tile = _round_up(pl.cdiv(Np, 2), 8)
        grid_n = pl.cdiv(Np, tile)

    out = pl.pallas_call(
        memory_gate_kernel,
        out_shape=jax.ShapeDtypeStruct((Np, P), text.dtype),
        grid_spec=pltpu.PrefetchScalarGridSpec(
            num_scalar_prefetch=0,
            grid=(grid_n,),
            in_specs=[
                pl.BlockSpec((tile, Dp), lambda i: (i, 0)),          # packed text rows
                pl.BlockSpec((tile, Dp), lambda i: (i, 0)),          # packed memory rows
                pl.BlockSpec((Dp, Dp), lambda i: (0, 0)),            # W1 (text half)
                pl.BlockSpec((Dp, Dp), lambda i: (0, 0)),            # W1 (memory half)
                pl.BlockSpec((1, Dp), lambda i: (0, 0)),             # b1 (tiled) row
                pl.BlockSpec((Dp, P), lambda i: (0, 0)),             # W2 block-diag
                pl.BlockSpec(memory_space=pltpu.MemorySpace.SMEM),   # b2 scalar
            ],
            out_specs=pl.BlockSpec((tile, P), lambda i: (i, 0)),
        ),
        compiler_params=pltpu.CompilerParams(
            dimension_semantics=("parallel",),
            vmem_limit_bytes=vmem_cap,
        ),
    )(t2, m2, w1t, w1m, b1p, w2p, b2s)

    # (Np, P) row-major is exactly the N gate values in original row order.
    return out.reshape(B, S, 1)


def memory_gate_reference(text, memory, w1, b1, w2, b2):
    x = jnp.concatenate([text, memory], axis=-1)
    h = jnp.maximum(x @ w1 + b1, 0.0)
    return jax.nn.sigmoid(h @ w2 + b2)


if __name__ == "__main__":
    # Small shapes consistent with the module: batch=2, seq=8, d_model=32.
    B, S, D = 2, 8, 32
    key = jax.random.PRNGKey(0)
    k_text, k_mem, k_w1, k_b1, k_w2, k_b2 = jax.random.split(key, 6)

    text = jax.random.normal(k_text, (B, S, D), dtype=jnp.float32)
    memory = jax.random.normal(k_mem, (B, S, D), dtype=jnp.float32)

    # Deterministic parameters, stored as (in, out) so forward is x @ W + b.
    w1 = jax.random.normal(k_w1, (2 * D, D), dtype=jnp.float32) * 0.05
    b1 = jax.random.normal(k_b1, (D,), dtype=jnp.float32) * 0.05
    w2 = jax.random.normal(k_w2, (D, 1), dtype=jnp.float32) * 0.05
    b2 = jax.random.normal(k_b2, (1,), dtype=jnp.float32) * 0.05

    out = memory_gate(text, memory, w1, b1, w2, b2)
    out = jax.block_until_ready(out)

    ref = memory_gate_reference(text, memory, w1, b1, w2, b2)
    assert out.shape == (B, S, 1)
    assert jnp.allclose(out, ref, atol=1e-4, rtol=1e-4), (
        f"max abs err {jnp.max(jnp.abs(out - ref))}")

    print("KERNEL_OK")
</pallas_src>

<mosaic_0001>
module attributes {stable_mosaic.version = 11 : i64} {
  func.func @memory_gate_kernel(%arg0: i32, %arg1: memref<4x128xf32, #tpu.memory_space<vmem>>, %arg2: memref<4x128xf32, #tpu.memory_space<vmem>>, %arg3: memref<128x128xf32, #tpu.memory_space<vmem>>, %arg4: memref<128x128xf32, #tpu.memory_space<vmem>>, %arg5: memref<1x128xf32, #tpu.memory_space<vmem>>, %arg6: memref<128x4xf32, #tpu.memory_space<vmem>>, %arg7: memref<1xf32, #tpu.memory_space<smem>>, %arg8: memref<4x4xf32, #tpu.memory_space<vmem>>) attributes {dimension_semantics = [#tpu.dimension_semantics<parallel>], iteration_bounds = array<i64: 1>, scalar_prefetch = 0 : i64, scratch_operands = 0 : i64, tpu.core_type = #tpu.core_type<tc>, window_params = [{transform_indices = @transform_0, window_bounds = array<i64: 4, 128>}, {transform_indices = @transform_1, window_bounds = array<i64: 4, 128>}, {pipeline_mode = #tpu.pipeline_mode<synchronous>, transform_indices = @transform_2, window_bounds = array<i64: 128, 128>}, {pipeline_mode = #tpu.pipeline_mode<synchronous>, transform_indices = @transform_3, window_bounds = array<i64: 128, 128>}, {pipeline_mode = #tpu.pipeline_mode<synchronous>, transform_indices = @transform_4, window_bounds = array<i64: 1, 128>}, {pipeline_mode = #tpu.pipeline_mode<synchronous>, transform_indices = @transform_5, window_bounds = array<i64: 128, 4>}, {transform_indices = @transform_6, window_bounds = array<i64: 1>}, {transform_indices = @transform_7, window_bounds = array<i64: 4, 4>}]} {
    %c0 = arith.constant 0 : index
    %c0_0 = arith.constant 0 : index
    %0 = vector.load %arg1[%c0, %c0_0] : memref<4x128xf32, #tpu.memory_space<vmem>>, vector<4x128xf32>
    %c0_1 = arith.constant 0 : index
    %c0_2 = arith.constant 0 : index
    %1 = vector.load %arg3[%c0_1, %c0_2] : memref<128x128xf32, #tpu.memory_space<vmem>>, vector<128x128xf32>
    %cst = arith.constant dense<0.000000e+00> : vector<4x128xf32>
    %2 = tpu.matmul %0, %1, %cst {dimension_numbers = #tpu.dot_dimension_numbers<[1], [0], [0], [1], [0, 0, 1, 1], [], []>} : vector<4x128xf32>, vector<128x128xf32>, vector<4x128xf32> -> vector<4x128xf32>
    %c0_3 = arith.constant 0 : index
    %c0_4 = arith.constant 0 : index
    %3 = vector.load %arg2[%c0_3, %c0_4] : memref<4x128xf32, #tpu.memory_space<vmem>>, vector<4x128xf32>
    %c0_5 = arith.constant 0 : index
    %c0_6 = arith.constant 0 : index
    %4 = vector.load %arg4[%c0_5, %c0_6] : memref<128x128xf32, #tpu.memory_space<vmem>>, vector<128x128xf32>
    %cst_7 = arith.constant dense<0.000000e+00> : vector<4x128xf32>
    %5 = tpu.matmul %3, %4, %cst_7 {dimension_numbers = #tpu.dot_dimension_numbers<[1], [0], [0], [1], [0, 0, 1, 1], [], []>} : vector<4x128xf32>, vector<128x128xf32>, vector<4x128xf32> -> vector<4x128xf32>
    %6 = arith.addf %2, %5 : vector<4x128xf32>
    %c0_8 = arith.constant 0 : index
    %c0_9 = arith.constant 0 : index
    %7 = vector.load %arg5[%c0_8, %c0_9] : memref<1x128xf32, #tpu.memory_space<vmem>>, vector<1x128xf32>
    %8 = vector.broadcast %7 : vector<1x128xf32> to vector<4x128xf32>
    %9 = arith.addf %6, %8 : vector<4x128xf32>
    %cst_10 = arith.constant 0.000000e+00 : f32
    %10 = vector.broadcast %cst_10 : f32 to vector<4x128xf32>
    %11 = arith.maximumf %9, %10 : vector<4x128xf32>
    %c0_11 = arith.constant 0 : index
    %c0_12 = arith.constant 0 : index
    %12 = vector.load %arg6[%c0_11, %c0_12] : memref<128x4xf32, #tpu.memory_space<vmem>>, vector<128x4xf32>
    %cst_13 = arith.constant dense<0.000000e+00> : vector<4x4xf32>
    %13 = tpu.matmul %11, %12, %cst_13 {dimension_numbers = #tpu.dot_dimension_numbers<[1], [0], [0], [1], [0, 0, 1, 1], [], []>} : vector<4x128xf32>, vector<128x4xf32>, vector<4x4xf32> -> vector<4x4xf32>
    %c0_14 = arith.constant 0 : index
    %14 = memref.load %arg7[%c0_14] : memref<1xf32, #tpu.memory_space<smem>>
    %15 = vector.broadcast %14 : f32 to vector<4x4xf32>
    %16 = arith.addf %13, %15 : vector<4x4xf32>
    %17 = arith.negf %16 : vector<4x4xf32>
    %18 = math.exp %17 : vector<4x4xf32>
    %cst_15 = arith.constant 1.000000e+00 : f32
    %19 = vector.broadcast %cst_15 : f32 to vector<4x4xf32>
    %20 = arith.addf %19, %18 : vector<4x4xf32>
    %21 = arith.divf %19, %20 : vector<4x4xf32>
    %c0_16 = arith.constant 0 : index
    %c0_17 = arith.constant 0 : index
    %22 = vector.load %arg8[%c0_16, %c0_17] : memref<4x4xf32, #tpu.memory_space<vmem>>, vector<4x4xf32>
    tpu.vector_store %arg8[%c0_16, %c0_17], %21 {strides = array<i32>} : memref<4x4xf32, #tpu.memory_space<vmem>>, vector<4x4xf32>,
    return
  }
  func.func @transform_0(%arg0: i32) -> (i32, i32) {
    %c0_i32 = arith.constant 0 : i32
    %c0_i32_0 = arith.constant 0 : i32
    return %arg0, %c0_i32 : i32, i32
  }
  func.func @transform_1(%arg0: i32) -> (i32, i32) {
    %c0_i32 = arith.constant 0 : i32
    %c0_i32_0 = arith.constant 0 : i32
    return %arg0, %c0_i32 : i32, i32
  }
  func.func @transform_2(%arg0: i32) -> (i32, i32) {
    %c0_i32 = arith.constant 0 : i32
    %c0_i32_0 = arith.constant 0 : i32
    %c0_i32_1 = arith.constant 0 : i32
    return %c0_i32, %c0_i32_0 : i32, i32
  }
  func.func @transform_3(%arg0: i32) -> (i32, i32) {
    %c0_i32 = arith.constant 0 : i32
    %c0_i32_0 = arith.constant 0 : i32
    %c0_i32_1 = arith.constant 0 : i32
    return %c0_i32, %c0_i32_0 : i32, i32
  }
  func.func @transform_4(%arg0: i32) -> (i32, i32) {
    %c0_i32 = arith.constant 0 : i32
    %c0_i32_0 = arith.constant 0 : i32
    %c0_i32_1 = arith.constant 0 : i32
    return %c0_i32, %c0_i32_0 : i32, i32
  }
  func.func @transform_5(%arg0: i32) -> (i32, i32) {
    %c0_i32 = arith.constant 0 : i32
    %c0_i32_0 = arith.constant 0 : i32
    %c0_i32_1 = arith.constant 0 : i32
    return %c0_i32, %c0_i32_0 : i32, i32
  }
  func.func @transform_6(%arg0: i32) -> i32 {
    %c0_i32 = arith.constant 0 : i32
    %c0_i32_0 = arith.constant 0 : i32
    return %c0_i32 : i32
  }
  func.func @transform_7(%arg0: i32) -> (i32, i32) {
    %c0_i32 = arith.constant 0 : i32
    %c0_i32_0 = arith.constant 0 : i32
    return %arg0, %c0_i32 : i32, i32
  }
}

</mosaic_0001>

<llo_original>
// kernel: tpu_custom_call.1
$region0: #{tpu_custom_call.1}
  #allocation0 [shape = 'u32[]', space=smem, size = 0x4, offset = 0x4, fixed_abs, tag = 'smem constant byte address 0x4 - core index']
  #allocation1 [shape = 'u32[144,128]{1,0:T(1,128)}', space=vmem, size = 0x12000, scoped, tag = 'internal scratch']
  #allocation2 [shape = 'f32[1]{0:T(128)S(6)}', space=smem, size = 0x200, scoped, tag = 'scoped memory for tpu_custom_call.1']
  %s0 = inlined_call_operand.vmem [shape: f32[4,128], index: 0, kind: input, shape index: {}]
  %s1 = inlined_call_operand.vmem [shape: f32[4,128], index: 1, kind: input, shape index: {}]
  %s2 = inlined_call_operand.vmem [shape: f32[128,128], index: 2, kind: input, shape index: {}]
  %s3 = inlined_call_operand.hbm [shape: f32[128,128], index: 3, kind: input, shape index: {}]
  %s4 = inlined_call_operand.vmem [shape: f32[1,128], index: 4, kind: input, shape index: {}]
  %s5 = inlined_call_operand.vmem [shape: f32[128,4], index: 5, kind: input, shape index: {}]
  %s6 = inlined_call_operand.<no memory space> [shape: f32[1], index: 6, kind: input, shape index: {}]
  %s7 = inlined_call_operand.hbm [shape: f32[4,4], index: 7, kind: output, shape index: {}]
  %s8 = sld [smem:[#allocation0]]
  $region42: #{tpu_custom_call.1} parent=0
    _
  %s10 = ssub.s32 1, %s8
  %s11 = scalar_select 0, %s10, %s8
  %12 = sst [smem:[#allocation2]] %s6
  $region1: #{tpu_custom_call.1} parent=0
    #allocation3 [shape = 'u8[65536]{0}', space=vmem, size = 0x10000, scoped, tag = 'input window, operand 3, single buffered']
    #allocation4 [shape = 's32[1]{0}', space=sflag, size = 0x4, scoped, tag = 'scoped memory for tpu_custom_call.1']
    #allocation5 [shape = 's32[1]{0}', space=sflag, size = 0x4, scoped, tag = 'scoped memory for tpu_custom_call.1']
    #allocation6 [shape = 'u8[2048]{0}', space=vmem, size = 0x800, scoped, tag = 'output window, operand 0, single buffered']
    %13 = vsyncpa [#allocation4], 0
    %14 = vsyncpa [#allocation5], 0
    // Predicated region
    $region2: #{tpu_custom_call.1} parent=1 // pred_check
      _
    $region3: #{tpu_custom_call.1} parent=1 // pred_check_branch
      %16 = sbr.rel (0) target = $region5
    $region4: #{tpu_custom_call.1} parent=1 // pred_region
      _
    $region5: #{tpu_custom_call.1} parent=1 // pred_fallthru
      _
    // Predicated region
    $region6: #{tpu_custom_call.1} parent=1 // pred_check
      _
    $region7: #{tpu_custom_call.1} parent=1 // pred_check_branch
      %18 = sbr.rel (0) target = $region9
    $region8: #{tpu_custom_call.1} parent=1 // pred_region
      _
    $region9: #{tpu_custom_call.1} parent=1 // pred_fallthru
      _
    // Predicated region
    $region10: #{tpu_custom_call.1} parent=1 // pred_check
      _
    $region11: #{tpu_custom_call.1} parent=1 // pred_check_branch
      %20 = sbr.rel (0) target = $region13
    $region12: #{tpu_custom_call.1} parent=1 // pred_region
      _
    $region13: #{tpu_custom_call.1} parent=1 // pred_fallthru
      _
    // Predicated region
    $region14: #{tpu_custom_call.1} parent=1 // pred_check
      _
    $region15: #{tpu_custom_call.1} parent=1 // pred_check_branch
      %22 = sbr.rel (0) target = $region17
    $region16: #{tpu_custom_call.1} parent=1 // pred_region
      %s24 = ssub.s32 2048, 2048
      %25 = vsyncadd [#allocation4], %s24
      %s26 = sshll.u32 [#allocation3], 4
      %s27 = int_to_ptr.vmem [resolvable:$true] %s26
      %32 = dma.hbm_to_vmem [thread:$0]  %s3, 2048, %s27, [#allocation4], 128, 128, 8
    $region17: #{tpu_custom_call.1} parent=1 // pred_fallthru
      _
    // Predicated region
    $region18: #{tpu_custom_call.1} parent=1 // pred_check
      _
    $region19: #{tpu_custom_call.1} parent=1 // pred_check_branch
      %34 = sbr.rel (0) target = $region21
    $region20: #{tpu_custom_call.1} parent=1 // pred_region
      _
    $region21: #{tpu_custom_call.1} parent=1 // pred_fallthru
      _
    // Predicated region
    $region22: #{tpu_custom_call.1} parent=1 // pred_check
      _
    $region23: #{tpu_custom_call.1} parent=1 // pred_check_branch
      %36 = sbr.rel (0) target = $region25
    $region24: #{tpu_custom_call.1} parent=1 // pred_region
      _
    $region25: #{tpu_custom_call.1} parent=1 // pred_fallthru
      _
    // Predicated region
    $region26: #{tpu_custom_call.1} parent=1 // pred_check
      _
    $region27: #{tpu_custom_call.1} parent=1 // pred_check_branch
      %38 = sbr.rel (0) target = $region29
    $region28: #{tpu_custom_call.1} parent=1 // pred_region
      _
    $region29: #{tpu_custom_call.1} parent=1 // pred_fallthru
      _
    // Predicated region
    $region30: #{tpu_custom_call.1} parent=1 // pred_check
      _
    $region31: #{tpu_custom_call.1} parent=1 // pred_check_branch
      %40 = sbr.rel (0) target = $region33
    $region32: #{tpu_custom_call.1} parent=1 // pred_region
      %41 = dma.done [#allocation4], 2048
    $region33: #{tpu_custom_call.1} parent=1 // pred_fallthru
      _
    %v42 = vld [vmem:[%s0] sm:$0xf]
    %v43 = vld [vmem:[%s2] sm:$0xff]
    %v44 = vld [vmem:[%s2 + $0x8] sm:$0xff]
    %v45 = vld [vmem:[%s2 + $0x10] sm:$0xff]
    %v46 = vld [vmem:[%s2 + $0x18] sm:$0xff]
    %v47 = vld [vmem:[%s2 + $0x20] sm:$0xff]
    %v48 = vld [vmem:[%s2 + $0x28] sm:$0xff]
    %v49 = vld [vmem:[%s2 + $0x30] sm:$0xff]
    %v50 = vld [vmem:[%s2 + $0x38] sm:$0xff]
    %v51 = vld [vmem:[%s2 + $0x40] sm:$0xff]
    %v52 = vld [vmem:[%s2 + $0x48] sm:$0xff]
    %v53 = vld [vmem:[%s2 + $0x50] sm:$0xff]
    %v54 = vld [vmem:[%s2 + $0x58] sm:$0xff]
    %v55 = vld [vmem:[%s2 + $0x60] sm:$0xff]
    %v56 = vld [vmem:[%s2 + $0x68] sm:$0xff]
    %v57 = vld [vmem:[%s2 + $0x70] sm:$0xff]
    %v58 = vld [vmem:[%s2 + $0x78] sm:$0xff]
    %v59 = vld [vmem:[%s1] sm:$0xf]
    %v60 = vld [vmem:[#allocation3] sm:$0xff]
    %v61 = vld [vmem:[#allocation3 + $0x8] sm:$0xff]
    %v62 = vld [vmem:[#allocation3 + $0x10] sm:$0xff]
    %v63 = vld [vmem:[#allocation3 + $0x18] sm:$0xff]
    %v64 = vld [vmem:[#allocation3 + $0x20] sm:$0xff]
    %v65 = vld [vmem:[#allocation3 + $0x28] sm:$0xff]
    %v66 = vld [vmem:[#allocation3 + $0x30] sm:$0xff]
    %v67 = vld [vmem:[#allocation3 + $0x38] sm:$0xff]
    %v68 = vld [vmem:[#allocation3 + $0x40] sm:$0xff]
    %v69 = vld [vmem:[#allocation3 + $0x48] sm:$0xff]
    %v70 = vld [vmem:[#allocation3 + $0x50] sm:$0xff]
    %v71 = vld [vmem:[#allocation3 + $0x58] sm:$0xff]
    %v72 = vld [vmem:[#allocation3 + $0x60] sm:$0xff]
    %v73 = vld [vmem:[#allocation3 + $0x68] sm:$0xff]
    %v74 = vld [vmem:[#allocation3 + $0x70] sm:$0xff]
    %v75 = vld [vmem:[#allocation3 + $0x78] sm:$0xff]
    %76 = vmatprep.subr.mxu0 0.0
    %77 = vmatpush1.msra.mxu0 %v75
    %78 = vmatprep.subr.mxu0 0.0
    %79 = vmatpush1.msra.mxu0 %v74
    %80 = vmatprep.subr.mxu0 0.0
    %81 = vmatpush1.msra.mxu0 %v73
    %82 = vmatprep.subr.mxu0 0.0
    %83 = vmatpush1.msra.mxu0 %v72
    %84 = vmatprep.subr.mxu0 0.0
    %85 = vmatpush1.msra.mxu0 %v71
    %86 = vmatprep.subr.mxu0 0.0
    %87 = vmatpush1.msra.mxu0 %v70
    %88 = vmatprep.subr.mxu0 0.0
    %89 = vmatpush1.msra.mxu0 %v69
    %90 = vmatprep.subr.mxu0 0.0
    %91 = vmatpush1.msra.mxu0 %v68
    %92 = vmatprep.subr.mxu0 0.0
    %93 = vmatpush1.msra.mxu0 %v67
    %94 = vmatprep.subr.mxu0 0.0
    %95 = vmatpush1.msra.mxu0 %v66
    %96 = vmatprep.subr.mxu0 0.0
    %97 = vmatpush1.msra.mxu0 %v65
    %98 = vmatprep.subr.mxu0 0.0
    %99 = vmatpush1.msra.mxu0 %v64
    %100 = vmatprep.subr.mxu0 0.0
    %101 = vmatpush1.msra.mxu0 %v63
    %102 = vmatprep.subr.mxu0 0.0
    %103 = vmatpush1.msra.mxu0 %v62
    %104 = vmatprep.subr.mxu0 0.0
    %105 = vmatpush1.msra.mxu0 %v61
    %106 = vmatprep.subr.mxu0 0.0
    %107 = vmatpush1.msra.mxu0 %v60
    %108 = vmatprep.subr.mxu0 0.0
    %109 = vmatpush2.msra.mxu0 0.0
    %110 = vmatprep.subr.mxu0 0.0
    %111 = vmatpush2.msra.mxu0 0.0
    %112 = vmatprep.subr.mxu0 0.0
    %113 = vmatpush2.msra.mxu0 0.0
    %114 = vmatprep.subr.mxu0 0.0
    %115 = vmatpush2.msra.mxu0 0.0
    %116 = vmatprep.subr.mxu0 0.0
    %117 = vmatpush2.msra.mxu0 0.0
    %118 = vmatprep.subr.mxu0 0.0
    %119 = vmatpush2.msra.mxu0 0.0
    %120 = vmatprep.subr.mxu0 0.0
    %121 = vmatpush2.msra.mxu0 0.0
    %122 = vmatprep.subr.mxu0 0.0
    %123 = vmatpush2.msra.mxu0 0.0
    %124 = vmatprep.subr.mxu0 0.0
    %125 = vmatpush2.msra.mxu0 0.0
    %126 = vmatprep.subr.mxu0 0.0
    %127 = vmatpush2.msra.mxu0 0.0
    %128 = vmatprep.subr.mxu0 0.0
    %129 = vmatpush2.msra.mxu0 0.0
    %130 = vmatprep.subr.mxu0 0.0
    %131 = vmatpush2.msra.mxu0 0.0
    %132 = vmatprep.subr.mxu0 0.0
    %133 = vmatpush2.msra.mxu0 0.0
    %134 = vmatprep.subr.mxu0 0.0
    %135 = vmatpush2.msra.mxu0 0.0
    %136 = vmatprep.subr.mxu0 0.0
    %137 = vmatpush2.msra.mxu0 0.0
    %138 = vmatprep.subr.mxu0 0.0
    %139 = vmatpush2.msra.mxu0 0.0
    %140 = vmatprep.mubr.f32.mxu0 0.0
    %141 = vmatmul.mubr.f32.gmra.mxu0 %v59
    %v142 = vpop.f32.mrf.mxu0
    %v143 = vadd.f32 0.0, %v142
    %v144 = vpop.f32.mrf.mxu0
    %145 = vdwg.mxu0
    %146 = vmatprep.subr.mxu0 0.0
    %147 = vmatpush1.msra.mxu0 %v58
    %148 = vmatprep.subr.mxu0 0.0
    %149 = vmatpush1.msra.mxu0 %v57
    %150 = vmatprep.subr.mxu0 0.0
    %151 = vmatpush1.msra.mxu0 %v56
    %152 = vmatprep.subr.mxu0 0.0
    %153 = vmatpush1.msra.mxu0 %v55
    %154 = vmatprep.subr.mxu0 0.0
    %155 = vmatpush1.msra.mxu0 %v54
    %156 = vmatprep.subr.mxu0 0.0
    %157 = vmatpush1.msra.mxu0 %v53
    %158 = vmatprep.subr.mxu0 0.0
    %159 = vmatpush1.msra.mxu0 %v52
    %160 = vmatprep.subr.mxu0 0.0
    %161 = vmatpush1.msra.mxu0 %v51
    %162 = vmatprep.subr.mxu0 0.0
    %163 = vmatpush1.msra.mxu0 %v50
    %164 = vmatprep.subr.mxu0 0.0
    %165 = vmatpush1.msra.mxu0 %v49
    %166 = vmatprep.subr.mxu0 0.0
    %167 = vmatpush1.msra.mxu0 %v48
    %168 = vmatprep.subr.mxu0 0.0
    %169 = vmatpush1.msra.mxu0 %v47
    %170 = vmatprep.subr.mxu0 0.0
    %171 = vmatpush1.msra.mxu0 %v46
    %172 = vmatprep.subr.mxu0 0.0
    %173 = vmatpush1.msra.mxu0 %v45
    %174 = vmatprep.subr.mxu0 0.0
    %175 = vmatpush1.msra.mxu0 %v44
    %176 = vmatprep.subr.mxu0 0.0
    %177 = vmatpush1.msra.mxu0 %v43
    %178 = vmatprep.subr.mxu0 0.0
    %179 = vmatpush2.msra.mxu0 0.0
    %180 = vmatprep.subr.mxu0 0.0
    %181 = vmatpush2.msra.mxu0 0.0
    %182 = vmatprep.subr.mxu0 0.0
    %183 = vmatpush2.msra.mxu0 0.0
    %184 = vmatprep.subr.mxu0 0.0
    %185 = vmatpush2.msra.mxu0 0.0
    %186 = vmatprep.subr.mxu0 0.0
    %187 = vmatpush2.msra.mxu0 0.0
    %188 = vmatprep.subr.mxu0 0.0
    %189 = vmatpush2.msra.mxu0 0.0
    %190 = vmatprep.subr.mxu0 0.0
    %191 = vmatpush2.msra.mxu0 0.0
    %192 = vmatprep.subr.mxu0 0.0
    %193 = vmatpush2.msra.mxu0 0.0
    %194 = vmatprep.subr.mxu0 0.0
    %195 = vmatpush2.msra.mxu0 0.0
    %196 = vmatprep.subr.mxu0 0.0
    %197 = vmatpush2.msra.mxu0 0.0
    %198 = vmatprep.subr.mxu0 0.0
    %199 = vmatpush2.msra.mxu0 0.0
    %200 = vmatprep.subr.mxu0 0.0
    %201 = vmatpush2.msra.mxu0 0.0
    %202 = vmatprep.subr.mxu0 0.0
    %203 = vmatpush2.msra.mxu0 0.0
    %204 = vmatprep.subr.mxu0 0.0
    %205 = vmatpush2.msra.mxu0 0.0
    %206 = vmatprep.subr.mxu0 0.0
    %207 = vmatpush2.msra.mxu0 0.0
    %208 = vmatprep.subr.mxu0 0.0
    %209 = vmatpush2.msra.mxu0 0.0
    %210 = vmatprep.mubr.f32.mxu0 0.0
    %211 = vmatmul.mubr.f32.gmra.mxu0 %v42
    %v212 = vpop.f32.mrf.mxu0
    %v213 = vadd.f32 %v143, %v212
    %v214 = vpop.f32.mrf.mxu0
    %215 = vdwg.mxu0
    %v216 = vld [vmem:[%s4] sm:$0x1]
    %v218 = vlaneseq
    %v219 = vshrl.u32 %v218, 7
    %v220 = vsub.s32 0, %v219
    %v221 = vrot.slane %v216, %v220
    %v223 = vadd.f32 %v213, %v221
    %v224 = vmax.f32 %v223, 0.0
    %v225 = vld [vmem:[%s5] sm:$0xff]
    %v226 = vld [vmem:[%s5 + $0x8] sm:$0xff]
    %v227 = vld [vmem:[%s5 + $0x10] sm:$0xff]
    %v228 = vld [vmem:[%s5 + $0x18] sm:$0xff]
    %v229 = vld [vmem:[%s5 + $0x20] sm:$0xff]
    %v230 = vld [vmem:[%s5 + $0x28] sm:$0xff]
    %v231 = vld [vmem:[%s5 + $0x30] sm:$0xff]
    %v232 = vld [vmem:[%s5 + $0x38] sm:$0xff]
    %v233 = vld [vmem:[%s5 + $0x40] sm:$0xff]
    %v234 = vld [vmem:[%s5 + $0x48] sm:$0xff]
    %v235 = vld [vmem:[%s5 + $0x50] sm:$0xff]
    %v236 = vld [vmem:[%s5 + $0x58] sm:$0xff]
    %v237 = vld [vmem:[%s5 + $0x60] sm:$0xff]
    %v238 = vld [vmem:[%s5 + $0x68] sm:$0xff]
    %v239 = vld [vmem:[%s5 + $0x70] sm:$0xff]
    %v240 = vld [vmem:[%s5 + $0x78] sm:$0xff]
    %s241 = sld [smem:[#allocation2]]
    %v242 = vstv %s241
    %243 = vmatprep.subr.mxu0 0.0
    %244 = vmatpush1.msra.mxu0 %v240
    %245 = vmatprep.subr.mxu0 0.0
    %246 = vmatpush1.msra.mxu0 %v239
    %247 = vmatprep.subr.mxu0 0.0
    %248 = vmatpush1.msra.mxu0 %v238
    %249 = vmatprep.subr.mxu0 0.0
    %250 = vmatpush1.msra.mxu0 %v237
    %251 = vmatprep.subr.mxu0 0.0
    %252 = vmatpush1.msra.mxu0 %v236
    %253 = vmatprep.subr.mxu0 0.0
    %254 = vmatpush1.msra.mxu0 %v235
    %255 = vmatprep.subr.mxu0 0.0
    %256 = vmatpush1.msra.mxu0 %v234
    %257 = vmatprep.subr.mxu0 0.0
    %258 = vmatpush1.msra.mxu0 %v233
    %259 = vmatprep.subr.mxu0 0.0
    %260 = vmatpush1.msra.mxu0 %v232
    %261 = vmatprep.subr.mxu0 0.0
    %262 = vmatpush1.msra.mxu0 %v231
    %263 = vmatprep.subr.mxu0 0.0
    %264 = vmatpush1.msra.mxu0 %v230
    %265 = vmatprep.subr.mxu0 0.0
    %266 = vmatpush1.msra.mxu0 %v229
    %267 = vmatprep.subr.mxu0 0.0
    %268 = vmatpush1.msra.mxu0 %v228
    %269 = vmatprep.subr.mxu0 0.0
    %270 = vmatpush1.msra.mxu0 %v227
    %271 = vmatprep.subr.mxu0 0.0
    %272 = vmatpush1.msra.mxu0 %v226
    %273 = vmatprep.subr.mxu0 0.0
    %274 = vmatpush1.msra.mxu0 %v225
    %275 = vmatprep.subr.mxu0 0.0
    %276 = vmatpush2.msra.mxu0 0.0
    %277 = vmatprep.subr.mxu0 0.0
    %278 = vmatpush2.msra.mxu0 0.0
    %279 = vmatprep.subr.mxu0 0.0
    %280 = vmatpush2.msra.mxu0 0.0
    %281 = vmatprep.subr.mxu0 0.0
    %282 = vmatpush2.msra.mxu0 0.0
    %283 = vmatprep.subr.mxu0 0.0
    %284 = vmatpush2.msra.mxu0 0.0
    %285 = vmatprep.subr.mxu0 0.0
    %286 = vmatpush2.msra.mxu0 0.0
    %287 = vmatprep.subr.mxu0 0.0
    %288 = vmatpush2.msra.mxu0 0.0
    %289 = vmatprep.subr.mxu0 0.0
    %290 = vmatpush2.msra.mxu0 0.0
    %291 = vmatprep.subr.mxu0 0.0
    %292 = vmatpush2.msra.mxu0 0.0
    %293 = vmatprep.subr.mxu0 0.0
    %294 = vmatpush2.msra.mxu0 0.0
    %295 = vmatprep.subr.mxu0 0.0
    %296 = vmatpush2.msra.mxu0 0.0
    %297 = vmatprep.subr.mxu0 0.0
    %298 = vmatpush2.msra.mxu0 0.0
    %299 = vmatprep.subr.mxu0 0.0
    %300 = vmatpush2.msra.mxu0 0.0
    %301 = vmatprep.subr.mxu0 0.0
    %302 = vmatpush2.msra.mxu0 0.0
    %303 = vmatprep.subr.mxu0 0.0
    %304 = vmatpush2.msra.mxu0 0.0
    %305 = vmatprep.subr.mxu0 0.0
    %306 = vmatpush2.msra.mxu0 0.0
    %307 = vmatprep.mubr.f32.mxu0 0.0
    %308 = vmatmul.mubr.f32.gmra.mxu0 %v224
    %v309 = vpop.f32.mrf.mxu0
    %v310 = vadd.f32 %v242, %v309
    %v311 = vpop.f32.mrf.mxu0
    %312 = vdwg.mxu0
    %v313 = vxor.u32 %v310, 2147483648
    %v314 = vmul.f32 %v313, 1.442695
    %v315 = vpow.pop %v314
    %v316 = vadd.f32 %v315, 1.0
    %v317 = vrcp.pop %v316
    %v318 = vmul.f32 1.0, %v317
    %vm319 = vcmask 27648
    %320 = vst.msk [vmem:[#allocation6] sm:$0xf] %vm319, %v318
    // Predicated region
    $region34: #{tpu_custom_call.1} parent=1 // pred_check
      _
    $region35: #{tpu_custom_call.1} parent=1 // pred_check_branch
      %322 = sbr.rel (0) target = $region37
    $region36: #{tpu_custom_call.1} parent=1 // pred_region
      %s324 = ssub.s32 64, 64
      %325 = vsyncadd [#allocation5], %s324
      %s327 = sshll.u32 [#allocation6], 4
      %s328 = int_to_ptr.vmem [resolvable:$true] %s327
      %330 = dma.vmem_to_hbm [thread:$0]  %s328, 64, %s7, [#allocation5]
    $region37: #{tpu_custom_call.1} parent=1 // pred_fallthru
      _
    // Predicated region
    $region38: #{tpu_custom_call.1} parent=1 // pred_check
      _
    $region39: #{tpu_custom_call.1} parent=1 // pred_check_branch
      %332 = sbr.rel (0) target = $region41
    $region40: #{tpu_custom_call.1} parent=1 // pred_region
      %333 = dma.done [#allocation5], 64
    $region41: #{tpu_custom_call.1} parent=1 // pred_fallthru
      _
    %334 = vsyncpa [#allocation4], 1
    %335 = vsyncpa [#allocation5], 1

</llo_original>
